<compile_context>
chip_gen: v5e
topology: v5e:2x2
jax: 0.10.0
libtpu: 0.0.40
codegen_flags: <defaults>
</compile_context>

<pallas_src>
import jax
import jax.numpy as jnp
from jax import lax
from jax.experimental import pallas as pl
from jax.experimental.pallas import tpu as pltpu


def ffn_kernel(x_ref, w1_ref, b1_ref, w2_ref, b2_ref, w3_ref, b3_ref, o_ref):
    x = x_ref[...]                                                    # (B, in)

    # Contract the in_features axis of both operands -> x @ W.T with no
    # explicit transpose (avoids XLU relayouts before each MXU push).
    contract_in_features = (((1,), (1,)), ((), ()))

    h1 = lax.dot_general(x, w1_ref[...],
                         dimension_numbers=contract_in_features,
                         preferred_element_type=jnp.float32)          # (B, H)
    h1 = jnp.maximum(h1 + b1_ref[...], 0.0)                           # ReLU

    h2 = lax.dot_general(h1, w2_ref[...],
                         dimension_numbers=contract_in_features,
                         preferred_element_type=jnp.float32)          # (B, H)
    h2 = jnp.maximum(h2 + b2_ref[...], 0.0)                           # ReLU

    # Final layer: w3 is (1, H) -> an N=1 MXU matmul wastes a full MXU push.
    # Do it on the VPU (broadcast mul) + XLU (lane reduce) instead.
    out = jnp.sum(h2 * w3_ref[...], axis=-1, keepdims=True)           # (B, 1)
    out = out + b3_ref[...]
    o_ref[...] = out.astype(o_ref.dtype)


def feed_forward_network(x, w1, b1, w2, b2, w3, b3, *, batch_tile=256):
    B, in_f = x.shape
    out_f = w3.shape[0]

    # Biases as (1, features) rows so they broadcast over batch inside the
    # kernel (matches bias.unsqueeze(0).expand_as(output)).
    b1r = b1.reshape(1, -1)
    b2r = b2.reshape(1, -1)
    b3r = b3.reshape(1, -1)
    args = (x, w1, b1r, w2, b2r, w3, b3r)

    if B <= batch_tile or B % batch_tile != 0:
        # Tiny / irregular batch: single fused block, no grid.
        full = lambda a: pl.BlockSpec(a.shape, lambda: (0,) * a.ndim)
        return pl.pallas_call(
            ffn_kernel,
            out_shape=jax.ShapeDtypeStruct((B, out_f), jnp.float32),
            in_specs=[full(a) for a in args],
            out_specs=pl.BlockSpec((B, out_f), lambda: (0, 0)),
        )(*args)

    # Large batch: 1-D grid over batch tiles; weights/biases replicated
    # (they stay resident in VMEM, only x / out stream through).
    rep = lambda a: pl.BlockSpec(a.shape, lambda i: (0,) * a.ndim)
    return pl.pallas_call(
        ffn_kernel,
        out_shape=jax.ShapeDtypeStruct((B, out_f), jnp.float32),
        grid=(B // batch_tile,),
        in_specs=[pl.BlockSpec((batch_tile, in_f), lambda i: (i, 0)),
                  rep(w1), rep(b1r), rep(w2), rep(b2r), rep(w3), rep(b3r)],
        out_specs=pl.BlockSpec((batch_tile, out_f), lambda i: (i, 0)),
        compiler_params=pltpu.CompilerParams(
            dimension_semantics=("parallel",)),
    )(*args)


def xavier_uniform(key, shape):
    # Matches torch.nn.init.xavier_uniform_ for a 2D (fan_out, fan_in) weight.
    fan_out, fan_in = shape
    bound = (6.0 / (fan_in + fan_out)) ** 0.5
    return jax.random.uniform(key, shape, jnp.float32, -bound, bound)


if __name__ == "__main__":
    input_size, hidden_size, batch = 2, 32, 8

    key = jax.random.PRNGKey(0)
    kx, k1, k2, k3 = jax.random.split(key, 4)

    x = jax.random.normal(kx, (batch, input_size), jnp.float32)

    fc1_w = xavier_uniform(k1, (hidden_size, input_size))
    fc1_b = jnp.zeros((hidden_size,), jnp.float32)
    fc2_w = xavier_uniform(k2, (hidden_size, hidden_size))
    fc2_b = jnp.zeros((hidden_size,), jnp.float32)
    fc3_w = xavier_uniform(k3, (1, hidden_size))
    fc3_b = jnp.zeros((1,), jnp.float32)

    out = feed_forward_network(x, fc1_w, fc1_b, fc2_w, fc2_b, fc3_w, fc3_b)
    jax.block_until_ready(out)

    # Pure-JAX reference check (same math as the PyTorch module's forward).
    h = jnp.maximum(x @ fc1_w.T + fc1_b, 0.0)
    h = jnp.maximum(h @ fc2_w.T + fc2_b, 0.0)
    ref = h @ fc3_w.T + fc3_b
    assert out.shape == (batch, 1)
    assert jnp.allclose(out, ref, atol=1e-5, rtol=1e-5)

    print("KERNEL_OK")
</pallas_src>

<mosaic_0001>
module attributes {stable_mosaic.version = 11 : i64} {
  func.func @ffn_kernel(%arg0: memref<8x2xf32, #tpu.memory_space<vmem>>, %arg1: memref<32x2xf32, #tpu.memory_space<vmem>>, %arg2: memref<1x32xf32, #tpu.memory_space<vmem>>, %arg3: memref<32x32xf32, #tpu.memory_space<vmem>>, %arg4: memref<1x32xf32, #tpu.memory_space<vmem>>, %arg5: memref<1x32xf32, #tpu.memory_space<vmem>>, %arg6: memref<1x1xf32, #tpu.memory_space<vmem>>, %arg7: memref<8x1xf32, #tpu.memory_space<vmem>>) attributes {dimension_semantics = [], scalar_prefetch = 0 : i64, scratch_operands = 0 : i64, tpu.core_type = #tpu.core_type<tc>} {
    %c0 = arith.constant 0 : index
    %c0_0 = arith.constant 0 : index
    %0 = vector.load %arg0[%c0, %c0_0] : memref<8x2xf32, #tpu.memory_space<vmem>>, vector<8x2xf32>
    %c0_1 = arith.constant 0 : index
    %c0_2 = arith.constant 0 : index
    %1 = vector.load %arg1[%c0_1, %c0_2] : memref<32x2xf32, #tpu.memory_space<vmem>>, vector<32x2xf32>
    %cst = arith.constant dense<0.000000e+00> : vector<8x32xf32>
    %2 = tpu.matmul %0, %1, %cst {dimension_numbers = #tpu.dot_dimension_numbers<[1], [1], [0], [0], [0, 0, 1, 0], [], []>} : vector<8x2xf32>, vector<32x2xf32>, vector<8x32xf32> -> vector<8x32xf32>
    %c0_3 = arith.constant 0 : index
    %c0_4 = arith.constant 0 : index
    %3 = vector.load %arg2[%c0_3, %c0_4] : memref<1x32xf32, #tpu.memory_space<vmem>>, vector<1x32xf32>
    %4 = vector.broadcast %3 : vector<1x32xf32> to vector<8x32xf32>
    %5 = arith.addf %2, %4 : vector<8x32xf32>
    %cst_5 = arith.constant 0.000000e+00 : f32
    %6 = vector.broadcast %cst_5 : f32 to vector<8x32xf32>
    %7 = arith.maximumf %5, %6 : vector<8x32xf32>
    %c0_6 = arith.constant 0 : index
    %c0_7 = arith.constant 0 : index
    %8 = vector.load %arg3[%c0_6, %c0_7] : memref<32x32xf32, #tpu.memory_space<vmem>>, vector<32x32xf32>
    %cst_8 = arith.constant dense<0.000000e+00> : vector<8x32xf32>
    %9 = tpu.matmul %7, %8, %cst_8 {dimension_numbers = #tpu.dot_dimension_numbers<[1], [1], [0], [0], [0, 0, 1, 0], [], []>} : vector<8x32xf32>, vector<32x32xf32>, vector<8x32xf32> -> vector<8x32xf32>
    %c0_9 = arith.constant 0 : index
    %c0_10 = arith.constant 0 : index
    %10 = vector.load %arg4[%c0_9, %c0_10] : memref<1x32xf32, #tpu.memory_space<vmem>>, vector<1x32xf32>
    %11 = vector.broadcast %10 : vector<1x32xf32> to vector<8x32xf32>
    %12 = arith.addf %9, %11 : vector<8x32xf32>
    %cst_11 = arith.constant 0.000000e+00 : f32
    %13 = vector.broadcast %cst_11 : f32 to vector<8x32xf32>
    %14 = arith.maximumf %12, %13 : vector<8x32xf32>
    %c0_12 = arith.constant 0 : index
    %c0_13 = arith.constant 0 : index
    %15 = vector.load %arg5[%c0_12, %c0_13] : memref<1x32xf32, #tpu.memory_space<vmem>>, vector<1x32xf32>
    %16 = vector.broadcast %15 : vector<1x32xf32> to vector<8x32xf32>
    %17 = arith.mulf %14, %16 : vector<8x32xf32>
    %cst_14 = arith.constant dense<0.000000e+00> : vector<8xf32>
    %18 = vector.multi_reduction <add>, %17, %cst_14 [1] : vector<8x32xf32> to vector<8xf32>
    %19 = vector.shape_cast %18 : vector<8xf32> to vector<8x1xf32>
    %c0_15 = arith.constant 0 : index
    %c0_16 = arith.constant 0 : index
    %20 = vector.load %arg6[%c0_15, %c0_16] : memref<1x1xf32, #tpu.memory_space<vmem>>, vector<1x1xf32>
    %21 = vector.broadcast %20 : vector<1x1xf32> to vector<8x1xf32>
    %22 = arith.addf %19, %21 : vector<8x1xf32>
    %c0_17 = arith.constant 0 : index
    %c0_18 = arith.constant 0 : index
    %23 = vector.load %arg7[%c0_17, %c0_18] : memref<8x1xf32, #tpu.memory_space<vmem>>, vector<8x1xf32>
    tpu.vector_store %arg7[%c0_17, %c0_18], %22 {strides = array<i32>} : memref<8x1xf32, #tpu.memory_space<vmem>>, vector<8x1xf32>,
    return
  }
}

</mosaic_0001>

<llo_original>
// kernel: tpu_custom_call.1
$region0: #{tpu_custom_call.1}
  #allocation0 [shape = 'u32[]', space=smem, size = 0x4, offset = 0x4, fixed_abs, tag = 'smem constant byte address 0x4 - core index']
  #allocation1 [shape = 'u32[72,128]{1,0:T(1,128)}', space=vmem, size = 0x9000, scoped, tag = 'internal scratch']
  #allocation2 [shape = 'f32[1,1]{1,0:T(1,128)S(1)}', space=vmem, size = 0x200, scoped, tag = 'scoped memory for tpu_custom_call.1']
  %s0 = inlined_call_operand.vmem [shape: f32[8,2], index: 0, kind: input, shape index: {}]
  %s1 = inlined_call_operand.vmem [shape: f32[32,2], index: 1, kind: input, shape index: {}]
  %s2 = inlined_call_operand.vmem [shape: f32[1,32], index: 2, kind: input, shape index: {}]
  %s3 = inlined_call_operand.vmem [shape: f32[32,32], index: 3, kind: input, shape index: {}]
  %s4 = inlined_call_operand.vmem [shape: f32[1,32], index: 4, kind: input, shape index: {}]
  %s5 = inlined_call_operand.vmem [shape: f32[1,32], index: 5, kind: input, shape index: {}]
  %s6 = inlined_call_operand.<no memory space> [shape: f32[1,1], index: 6, kind: input, shape index: {}]
  %s7 = inlined_call_operand.vmem [shape: f32[8,1], index: 7, kind: output, shape index: {}]
  %s8 = sld [smem:[#allocation0]]
  $region38: #{tpu_custom_call.1} parent=0
    _
  %s10 = ssub.s32 1, %s8
  %s11 = scalar_select 0, %s10, %s8
  %v12 = vstv %s6
  %13 = vst [vmem:[#allocation2] sm:$0x1] %v12
  // Predicated region
  $region2: #{tpu_custom_call.1} parent=0 // pred_check
    _
  $region3: #{tpu_custom_call.1} parent=0 // pred_check_branch
    %15 = sbr.rel (0) target = $region5
  $region4: #{tpu_custom_call.1} parent=0 // pred_region
    _
  $region5: #{tpu_custom_call.1} parent=0 // pred_fallthru
    _
  // Predicated region
  $region6: #{tpu_custom_call.1} parent=0 // pred_check
    _
  $region7: #{tpu_custom_call.1} parent=0 // pred_check_branch
    %17 = sbr.rel (0) target = $region9
  $region8: #{tpu_custom_call.1} parent=0 // pred_region
    _
  $region9: #{tpu_custom_call.1} parent=0 // pred_fallthru
    _
  // Predicated region
  $region10: #{tpu_custom_call.1} parent=0 // pred_check
    _
  $region11: #{tpu_custom_call.1} parent=0 // pred_check_branch
    %19 = sbr.rel (0) target = $region13
  $region12: #{tpu_custom_call.1} parent=0 // pred_region
    _
  $region13: #{tpu_custom_call.1} parent=0 // pred_fallthru
    _
  // Predicated region
  $region14: #{tpu_custom_call.1} parent=0 // pred_check
    _
  $region15: #{tpu_custom_call.1} parent=0 // pred_check_branch
    %21 = sbr.rel (0) target = $region17
  $region16: #{tpu_custom_call.1} parent=0 // pred_region
    _
  $region17: #{tpu_custom_call.1} parent=0 // pred_fallthru
    _
  // Predicated region
  $region18: #{tpu_custom_call.1} parent=0 // pred_check
    _
  $region19: #{tpu_custom_call.1} parent=0 // pred_check_branch
    %23 = sbr.rel (0) target = $region21
  $region20: #{tpu_custom_call.1} parent=0 // pred_region
    _
  $region21: #{tpu_custom_call.1} parent=0 // pred_fallthru
    _
  // Predicated region
  $region22: #{tpu_custom_call.1} parent=0 // pred_check
    _
  $region23: #{tpu_custom_call.1} parent=0 // pred_check_branch
    %25 = sbr.rel (0) target = $region25
  $region24: #{tpu_custom_call.1} parent=0 // pred_region
    _
  $region25: #{tpu_custom_call.1} parent=0 // pred_fallthru
    _
  // Predicated region
  $region26: #{tpu_custom_call.1} parent=0 // pred_check
    _
  $region27: #{tpu_custom_call.1} parent=0 // pred_check_branch
    %27 = sbr.rel (0) target = $region29
  $region28: #{tpu_custom_call.1} parent=0 // pred_region
    _
  $region29: #{tpu_custom_call.1} parent=0 // pred_fallthru
    _
  %v28 = vld [vmem:[%s0] sm:$0xff]
  %v29 = vld [vmem:[%s1] sm:$0xff]
  %v30 = vld [vmem:[%s1 + $0x8] sm:$0xff]
  %v31 = vld [vmem:[%s1 + $0x10] sm:$0xff]
  %v32 = vld [vmem:[%s1 + $0x18] sm:$0xff]
  %v33 = vld [vmem:[%s2] sm:$0x1]
  %v35 = vperm.slane %v33, 0
  %vm37 = vcmask 15360
  %v39 = vsel %vm37, %v28, 0
  %v42 = vsel %vm37, %v29, 0
  %v45 = vsel %vm37, %v30, 0
  %v48 = vsel %vm37, %v31, 0
  %v51 = vsel %vm37, %v32, 0
  %53 = vmatpush.xpose.msra.mxu0 0.0
  %54 = vmatpush.xpose.msra.mxu0 0.0
  %55 = vmatpush.xpose.msra.mxu0 0.0
  %56 = vmatpush.xpose.msra.mxu0 0.0
  %57 = vmatpush.xpose.msra.mxu0 0.0
  %58 = vmatpush.xpose.msra.mxu0 0.0
  %59 = vmatpush.xpose.msra.mxu0 0.0
  %60 = vmatpush.xpose.msra.mxu0 0.0
  %61 = vmatpush.xpose.msra.mxu0 0.0
  %62 = vmatpush.xpose.msra.mxu0 0.0
  %63 = vmatpush.xpose.msra.mxu0 0.0
  %64 = vmatpush.xpose.msra.mxu0 0.0
  %65 = vmatpush.xpose.msra.mxu0 %v51
  %66 = vmatpush.xpose.msra.mxu0 %v48
  %67 = vmatpush.xpose.msra.mxu0 %v45
  %68 = vmatpush.xpose.msra.mxu0 %v42
  %69 = vmatmul.f32.gmra.mxu0 %v39
  %v70 = vpop.f32.mrf.mxu0
  %v71 = vadd.f32 %v35, %v70
  %72 = vdwg.mxu0
  %v73 = vmax.f32 %v71, 0.0
  %v74 = vld [vmem:[%s3] sm:$0xff]
  %v75 = vld [vmem:[%s3 + $0x8] sm:$0xff]
  %v76 = vld [vmem:[%s3 + $0x10] sm:$0xff]
  %v77 = vld [vmem:[%s3 + $0x18] sm:$0xff]
  %v78 = vld [vmem:[%s4] sm:$0x1]
  %v80 = vperm.slane %v78, 0
  %vm82 = vcmask 261120
  %v84 = vsel %vm82, %v73, 0
  %v87 = vsel %vm82, %v74, 0
  %v90 = vsel %vm82, %v75, 0
  %v93 = vsel %vm82, %v76, 0
  %v96 = vsel %vm82, %v77, 0
  %98 = vmatpush.xpose.msra.mxu0 0.0
  %99 = vmatpush.xpose.msra.mxu0 0.0
  %100 = vmatpush.xpose.msra.mxu0 0.0
  %101 = vmatpush.xpose.msra.mxu0 0.0
  %102 = vmatpush.xpose.msra.mxu0 0.0
  %103 = vmatpush.xpose.msra.mxu0 0.0
  %104 = vmatpush.xpose.msra.mxu0 0.0
  %105 = vmatpush.xpose.msra.mxu0 0.0
  %106 = vmatpush.xpose.msra.mxu0 0.0
  %107 = vmatpush.xpose.msra.mxu0 0.0
  %108 = vmatpush.xpose.msra.mxu0 0.0
  %109 = vmatpush.xpose.msra.mxu0 0.0
  %110 = vmatpush.xpose.msra.mxu0 %v96
  %111 = vmatpush.xpose.msra.mxu0 %v93
  %112 = vmatpush.xpose.msra.mxu0 %v90
  %113 = vmatpush.xpose.msra.mxu0 %v87
  %114 = vmatmul.f32.gmra.mxu0 %v84
  %v115 = vpop.f32.mrf.mxu0
  %v116 = vadd.f32 %v80, %v115
  %117 = vdwg.mxu0
  %v118 = vmax.f32 %v116, 0.0
  %v119 = vld [vmem:[%s5] sm:$0x1]
  %v121 = vperm.slane %v119, 0
  %v123 = vmul.f32 %v118, %v121
  %v124 = vsel %vm82, %v123, 0.0
  %125 = vadd.xlane.f32.xlu0 %v124
  %v126 = vpop.xlane.xlu0 %125
  %v127 = vld [vmem:[#allocation2] sm:$0x1]
  %v129 = vperm.slane %v127, 0
  %v131 = vadd.f32 %v126, %v129
  %vm132 = vcmask 7168
  %133 = vst.msk [vmem:[%s7] sm:$0xff] %vm132, %v131
  // Predicated region
  $region30: #{tpu_custom_call.1} parent=0 // pred_check
    _
  $region31: #{tpu_custom_call.1} parent=0 // pred_check_branch
    %135 = sbr.rel (0) target = $region33
  $region32: #{tpu_custom_call.1} parent=0 // pred_region
    _
  $region33: #{tpu_custom_call.1} parent=0 // pred_fallthru
    _
  // Predicated region
  $region34: #{tpu_custom_call.1} parent=0 // pred_check
    _
  $region35: #{tpu_custom_call.1} parent=0 // pred_check_branch
    %137 = sbr.rel (0) target = $region37
  $region36: #{tpu_custom_call.1} parent=0 // pred_region
    _
  $region37: #{tpu_custom_call.1} parent=0 // pred_fallthru
    _

</llo_original>
